<compile_context>
chip_gen: v5e
topology: v5e:2x2
jax: 0.10.0
libtpu: 0.0.40
codegen_flags: <defaults>
</compile_context>

<pallas_src>
import functools

import jax
import jax.numpy as jnp
from jax.experimental import pallas as pl
from jax.experimental.pallas import tpu as pltpu


_VMEM_SPEC = pl.BlockSpec(memory_space=pltpu.MemorySpace.VMEM)


# ------------------------------ Fused kernel -------------------------------- #

def _decoder_step_kernel(*refs, num_layers, hidden_size):
    """Fused decoder step.

    Ref layout (inputs then outputs):
      refs[0]         : ids    (B_pad, 1)      int32 token ids (padded rows 0)
      refs[1]         : emb    (V, E)          bf16  embedding table (row 0 zeros)
      refs[2]         : h0     (B_pad, 2L*H)   f32   lane-dense packed state
      refs[3]         : c0     (B_pad, 2L*H)   f32
      refs[4 + 3l]    : W_x_l  (In_l, 8H)      bf16  input->gates (both dirs)
      refs[5 + 3l]    : W_h_l  (2H, 8H)        bf16  hidden->gates (block per dir)
      refs[6 + 3l]    : b_l    (1, 8H)         f32   folded b_ih + b_hh
      refs[4 + 3L]    : fc_w   (2H, O_pad)     bf16
      refs[5 + 3L]    : fc_b   (1, O_pad)      f32
      refs[6 + 3L]    : pred   (B_pad, O_pad)  f32   [output]
      refs[7 + 3L]    : h_out  (B_pad, 2L*H)   f32   [output, aliases h0]
      refs[8 + 3L]    : c_out  (B_pad, 2L*H)   f32   [output, aliases c0]

    Gate-column order inside every 8H block: [i_f i_r | f_f f_r | o_f o_r | g_f g_r].
    """
    H = hidden_size
    L = num_layers

    ids_ref, emb_ref, h0_ref, c0_ref = refs[0], refs[1], refs[2], refs[3]
    wx = [refs[4 + 3 * l] for l in range(L)]
    wh = [refs[5 + 3 * l] for l in range(L)]
    bb = [refs[6 + 3 * l] for l in range(L)]
    fc_w_ref = refs[4 + 3 * L]
    fc_b_ref = refs[5 + 3 * L]
    pred_ref = refs[6 + 3 * L]
    h_out_ref = refs[7 + 3 * L]
    c_out_ref = refs[8 + 3 * L]

    # Embedding gather as a one-hot matmul (MXU).
    ids = ids_ref[...]                                        # (B_pad, 1) int32
    Bp = ids.shape[0]
    V = emb_ref.shape[0]
    one_hot = jnp.where(
        jax.lax.broadcasted_iota(jnp.int32, (Bp, V), 1) == ids, 1.0, 0.0)
    x = jnp.dot(one_hot.astype(emb_ref.dtype), emb_ref[...],
                preferred_element_type=jnp.float32)           # (B_pad, E) f32
    # dropout(embedding): identity in eval mode.

    # Full-state loads (single vregs at toy size), before any aliased store.
    h0 = h0_ref[...]                                          # (B_pad, 2L*H) f32
    c0 = c0_ref[...]

    for l in range(L):
        lo, hi = 2 * l * H, 2 * (l + 1) * H
        h_prev = h0[:, lo:hi]                                 # (B_pad, 2H) [f|r]
        c_prev = c0[:, lo:hi]

        # Two small MXU passes (no lane concat): x @ W_x + h_prev @ W_h + b.
        gates = (jnp.dot(x.astype(wx[l].dtype), wx[l][...],
                         preferred_element_type=jnp.float32)
                 + jnp.dot(h_prev.astype(wh[l].dtype), wh[l][...],
                           preferred_element_type=jnp.float32)
                 + bb[l][...])                                # (B_pad, 8H) f32

        # One sigmoid over the contiguous [i|f|o] block, one tanh over g;
        # elementwise math covers fwd+rev together on (B_pad, 2H) slabs.
        sig = jax.nn.sigmoid(gates[:, :6 * H])
        g_g = jnp.tanh(gates[:, 6 * H:])
        i_g = sig[:, 0:2 * H]
        f_g = sig[:, 2 * H:4 * H]
        o_g = sig[:, 4 * H:6 * H]
        c_new = f_g * c_prev + i_g * g_g                      # (B_pad, 2H)
        h_new = o_g * jnp.tanh(c_new)                         # (B_pad, 2H) [f|r]

        # Direct lane-dense stores into the packed state outputs.
        h_out_ref[:, lo:hi] = h_new.astype(h_out_ref.dtype)
        c_out_ref[:, lo:hi] = c_new.astype(c_out_ref.dtype)

        # seq_len == 1: layer output = [h_fwd | h_rev] (already lane-ordered).
        x = h_new
        # inter-layer dropout: identity in eval mode.

    # fc head on the last layer's output (O padded to a lane-dense width).
    pred_ref[...] = (jnp.dot(x.astype(fc_w_ref.dtype), fc_w_ref[...],
                             preferred_element_type=jnp.float32)
                     + fc_b_ref[...]).astype(pred_ref.dtype)


# ------------------------------ JAX wrapper --------------------------------- #

def _decoder_forward(params, x, hidden_state, cell_state, *,
                     num_layers, hidden_size, output_size, out_pad):
    emb, layer_wx, layer_wh, layer_bs, fc_w, fc_b = params
    L, H = num_layers, hidden_size
    B = x.shape[0]
    B_pad = max(8, ((B + 7) // 8) * 8)       # full sublane tile
    pad_b = B_pad - B

    ids = jnp.pad(x.astype(jnp.int32), (0, pad_b)).reshape(B_pad, 1)

    # Pack PyTorch (2L, B, H) state into a lane-dense (B_pad, 2L*H) slab:
    # columns [2lH : 2lH+H] = layer l fwd, [2lH+H : 2(l+1)H] = layer l rev.
    def pack(s):
        slab = jnp.transpose(s, (1, 0, 2)).reshape(B, 2 * L * H)
        return jnp.pad(slab, ((0, pad_b), (0, 0)))

    h0 = pack(hidden_state)
    c0 = pack(cell_state)

    kernel = functools.partial(_decoder_step_kernel,
                               num_layers=L, hidden_size=H)
    inputs = [ids, emb, h0, c0]
    for l in range(L):
        inputs += [layer_wx[l], layer_wh[l], layer_bs[l]]
    inputs += [fc_w, fc_b]

    out_shapes = (jax.ShapeDtypeStruct((B_pad, out_pad), jnp.float32),
                  jax.ShapeDtypeStruct((B_pad, 2 * L * H), jnp.float32),
                  jax.ShapeDtypeStruct((B_pad, 2 * L * H), jnp.float32))

    preds_full, h_slab, c_slab = pl.pallas_call(
        kernel,
        out_shape=out_shapes,
        in_specs=[_VMEM_SPEC] * len(inputs),
        out_specs=(_VMEM_SPEC, _VMEM_SPEC, _VMEM_SPEC),
        # In-place state carry: h0 -> h_out, c0 -> c_out.
        input_output_aliases={2: 1, 3: 2},
    )(*inputs)

    # Un-pack / un-pad back to the PyTorch layout (tiny XLA layout plumbing).
    preds = preds_full[:B, :output_size]
    h_out = h_slab[:B].reshape(B, 2 * L, H).transpose(1, 0, 2)
    c_out = c_slab[:B].reshape(B, 2 * L, H).transpose(1, 0, 2)
    return preds, h_out, c_out


# ------------------------------ Module (JAX) -------------------------------- #

class DecoderLSTMPallas:
    """JAX/Pallas re-implementation of the PyTorch DecoderLSTM forward pass."""

    def __init__(self, input_size, embedding_size, hidden_size, num_layers,
                 output_size, dropout, key):
        self.input_size = input_size
        self.embedding_size = embedding_size
        self.hidden_size = hidden_size
        self.num_layers = num_layers
        self.output_size = output_size
        self.dropout = dropout  # identity at inference

        H = hidden_size
        stdv = 1.0 / float(H) ** 0.5
        stdv_fc = 1.0 / float(2 * H) ** 0.5   # PyTorch Linear: 1/sqrt(fan_in)

        n_keys = 1 + num_layers * 2 * 4 + 2
        keys = list(jax.random.split(key, n_keys))
        k = iter(keys)

        def u(key_, shape, s):
            return jax.random.uniform(key_, shape, jnp.float32, -s, s)

        # Embedding (padding_idx=0 -> row 0 zeroed); stored bf16 for the MXU.
        emb = jax.random.normal(next(k), (input_size, embedding_size),
                                dtype=jnp.float32)
        emb = emb.at[0].set(0.0).astype(jnp.bfloat16)

        def regroup_cols(wf, wr):
            # PyTorch gate order [i, f, g, o] per direction; regroup columns to
            # [i_f i_r | f_f f_r | o_f o_r | g_f g_r] (tanh gate last).
            return jnp.concatenate([
                wf[:, 0 * H:1 * H], wr[:, 0 * H:1 * H],   # i
                wf[:, 1 * H:2 * H], wr[:, 1 * H:2 * H],   # f
                wf[:, 3 * H:4 * H], wr[:, 3 * H:4 * H],   # o
                wf[:, 2 * H:3 * H], wr[:, 2 * H:3 * H],   # g
            ], axis=1)

        layer_wx, layer_wh, layer_bs = [], [], []
        for layer in range(num_layers):
            in_sz = embedding_size if layer == 0 else 2 * H
            w_ih_f = u(next(k), (in_sz, 4 * H), stdv)
            w_hh_f = u(next(k), (H, 4 * H), stdv)
            b_f = u(next(k), (4 * H,), stdv) + u(next(k), (4 * H,), stdv)
            w_ih_r = u(next(k), (in_sz, 4 * H), stdv)
            w_hh_r = u(next(k), (H, 4 * H), stdv)
            b_r = u(next(k), (4 * H,), stdv) + u(next(k), (4 * H,), stdv)

            # Input->gates, both directions, regrouped gate columns.
            w_x = regroup_cols(w_ih_f, w_ih_r)                      # (in_sz, 8H)

            # Hidden->gates for packed [h_fwd | h_rev] rows.
            w_h = jnp.zeros((2 * H, 8 * H), jnp.float32)
            w_h = w_h.at[:H, 0 * H:1 * H].set(w_hh_f[:, 0 * H:1 * H])  # i_f
            w_h = w_h.at[:H, 2 * H:3 * H].set(w_hh_f[:, 1 * H:2 * H])  # f_f
            w_h = w_h.at[:H, 4 * H:5 * H].set(w_hh_f[:, 3 * H:4 * H])  # o_f
            w_h = w_h.at[:H, 6 * H:7 * H].set(w_hh_f[:, 2 * H:3 * H])  # g_f
            w_h = w_h.at[H:, 1 * H:2 * H].set(w_hh_r[:, 0 * H:1 * H])  # i_r
            w_h = w_h.at[H:, 3 * H:4 * H].set(w_hh_r[:, 1 * H:2 * H])  # f_r
            w_h = w_h.at[H:, 5 * H:6 * H].set(w_hh_r[:, 3 * H:4 * H])  # o_r
            w_h = w_h.at[H:, 7 * H:8 * H].set(w_hh_r[:, 2 * H:3 * H])  # g_r

            b_big = regroup_cols(b_f[None, :], b_r[None, :])        # (1, 8H)

            layer_wx.append(w_x.astype(jnp.bfloat16))
            layer_wh.append(w_h.astype(jnp.bfloat16))
            layer_bs.append(b_big)                                  # f32

        # fc: Linear(2H -> O), stored transposed, padded to a lane-dense width.
        out_pad = max(128, ((output_size + 127) // 128) * 128)
        fc_w = u(next(k), (2 * H, output_size), stdv_fc)
        fc_b = u(next(k), (output_size,), stdv_fc)
        fc_w_pad = jnp.zeros((2 * H, out_pad), jnp.float32)
        fc_w_pad = fc_w_pad.at[:, :output_size].set(fc_w).astype(jnp.bfloat16)
        fc_b_pad = jnp.zeros((1, out_pad), jnp.float32).at[0, :output_size].set(fc_b)

        self._params = (emb, tuple(layer_wx), tuple(layer_wh), tuple(layer_bs),
                        fc_w_pad, fc_b_pad)
        self._forward = jax.jit(functools.partial(
            _decoder_forward,
            num_layers=num_layers, hidden_size=hidden_size,
            output_size=output_size, out_pad=out_pad))

    def __call__(self, x, hidden_state, cell_state):
        """
        x            : (batch,) int32 token ids
        hidden_state : (num_layers*2, batch, hidden_size) float32
        cell_state   : (num_layers*2, batch, hidden_size) float32
        returns (predictions (batch, output_size), hidden_state, cell_state)
        """
        return self._forward(self._params, x, hidden_state, cell_state)


# --------------------------------- Driver ----------------------------------- #

if __name__ == "__main__":
    INPUT_SIZE = 16      # decoder vocab
    EMB = 32
    HIDDEN = 32
    NUM_LAYERS = 2
    OUTPUT_SIZE = 16
    BATCH = 2

    root = jax.random.PRNGKey(0)
    k_param, k_x, k_h, k_c = jax.random.split(root, 4)

    model = DecoderLSTMPallas(INPUT_SIZE, EMB, HIDDEN, NUM_LAYERS,
                              OUTPUT_SIZE, dropout=0.5, key=k_param)

    x = jax.random.randint(k_x, (BATCH,), 0, INPUT_SIZE, dtype=jnp.int32)
    hidden_state = jax.random.normal(k_h, (NUM_LAYERS * 2, BATCH, HIDDEN),
                                     dtype=jnp.float32)
    cell_state = jax.random.normal(k_c, (NUM_LAYERS * 2, BATCH, HIDDEN),
                                   dtype=jnp.float32)

    preds, h_out, c_out = model(x, hidden_state, cell_state)
    jax.block_until_ready((preds, h_out, c_out))

    assert preds.shape == (BATCH, OUTPUT_SIZE)
    assert h_out.shape == (NUM_LAYERS * 2, BATCH, HIDDEN)
    assert c_out.shape == (NUM_LAYERS * 2, BATCH, HIDDEN)
    assert bool(jnp.all(jnp.isfinite(preds)))
    assert bool(jnp.all(jnp.isfinite(h_out)))
    assert bool(jnp.all(jnp.isfinite(c_out)))
    print("KERNEL_OK")
</pallas_src>

<mosaic_0001>
module attributes {stable_mosaic.version = 11 : i64} {
  func.func @_decoder_step_kernel(%arg0: memref<8x1xi32, #tpu.memory_space<vmem>>, %arg1: memref<16x32xbf16, #tpu.memory_space<vmem>>, %arg2: memref<8x128xf32, #tpu.memory_space<vmem>>, %arg3: memref<8x128xf32, #tpu.memory_space<vmem>>, %arg4: memref<32x256xbf16, #tpu.memory_space<vmem>>, %arg5: memref<64x256xbf16, #tpu.memory_space<vmem>>, %arg6: memref<1x256xf32, #tpu.memory_space<vmem>>, %arg7: memref<64x256xbf16, #tpu.memory_space<vmem>>, %arg8: memref<64x256xbf16, #tpu.memory_space<vmem>>, %arg9: memref<1x256xf32, #tpu.memory_space<vmem>>, %arg10: memref<64x128xbf16, #tpu.memory_space<vmem>>, %arg11: memref<1x128xf32, #tpu.memory_space<vmem>>, %arg12: memref<8x128xf32, #tpu.memory_space<vmem>>, %arg13: memref<8x128xf32, #tpu.memory_space<vmem>>, %arg14: memref<8x128xf32, #tpu.memory_space<vmem>>) attributes {dimension_semantics = [], scalar_prefetch = 0 : i64, scratch_operands = 0 : i64, tpu.core_type = #tpu.core_type<tc>} {
    %c0 = arith.constant 0 : index
    %c0_0 = arith.constant 0 : index
    %0 = vector.load %arg0[%c0, %c0_0] : memref<8x1xi32, #tpu.memory_space<vmem>>, vector<8x1xi32>
    %1 = tpu.iota {dimensions = array<i32: 1>} : vector<8x16xi32>
    %2 = vector.broadcast %0 : vector<8x1xi32> to vector<8x16xi32>
    %3 = arith.cmpi eq, %1, %2 : vector<8x16xi32>
    %cst = arith.constant 1.000000e+00 : f32
    %cst_1 = arith.constant 0.000000e+00 : f32
    %4 = vector.broadcast %cst : f32 to vector<8x16xf32>
    %5 = vector.broadcast %cst_1 : f32 to vector<8x16xf32>
    %6 = arith.select %3, %4, %5 : vector<8x16xi1>, vector<8x16xf32>
    %7 = arith.truncf %6 : vector<8x16xf32> to vector<8x16xbf16>
    %c0_2 = arith.constant 0 : index
    %c0_3 = arith.constant 0 : index
    %8 = vector.load %arg1[%c0_2, %c0_3] : memref<16x32xbf16, #tpu.memory_space<vmem>>, vector<16x32xbf16>
    %cst_4 = arith.constant dense<0.000000e+00> : vector<8x32xf32>
    %9 = tpu.matmul %7, %8, %cst_4 {dimension_numbers = #tpu.dot_dimension_numbers<[1], [0], [0], [1], [0, 0, 1, 1], [], []>} : vector<8x16xbf16>, vector<16x32xbf16>, vector<8x32xf32> -> vector<8x32xf32>
    %c0_5 = arith.constant 0 : index
    %c0_6 = arith.constant 0 : index
    %10 = vector.load %arg2[%c0_5, %c0_6] : memref<8x128xf32, #tpu.memory_space<vmem>>, vector<8x128xf32>
    %c0_7 = arith.constant 0 : index
    %c0_8 = arith.constant 0 : index
    %11 = vector.load %arg3[%c0_7, %c0_8] : memref<8x128xf32, #tpu.memory_space<vmem>>, vector<8x128xf32>
    %12 = vector.extract_strided_slice %10 {offsets = [0, 0], sizes = [8, 64], strides = [1, 1]} : vector<8x128xf32> to vector<8x64xf32>
    %13 = vector.extract_strided_slice %11 {offsets = [0, 0], sizes = [8, 64], strides = [1, 1]} : vector<8x128xf32> to vector<8x64xf32>
    %14 = arith.truncf %9 : vector<8x32xf32> to vector<8x32xbf16>
    %c0_9 = arith.constant 0 : index
    %c0_10 = arith.constant 0 : index
    %15 = vector.load %arg4[%c0_9, %c0_10] : memref<32x256xbf16, #tpu.memory_space<vmem>>, vector<32x256xbf16>
    %cst_11 = arith.constant dense<0.000000e+00> : vector<8x256xf32>
    %16 = tpu.matmul %14, %15, %cst_11 {dimension_numbers = #tpu.dot_dimension_numbers<[1], [0], [0], [1], [0, 0, 1, 1], [], []>} : vector<8x32xbf16>, vector<32x256xbf16>, vector<8x256xf32> -> vector<8x256xf32>
    %17 = arith.truncf %12 : vector<8x64xf32> to vector<8x64xbf16>
    %c0_12 = arith.constant 0 : index
    %c0_13 = arith.constant 0 : index
    %18 = vector.load %arg5[%c0_12, %c0_13] : memref<64x256xbf16, #tpu.memory_space<vmem>>, vector<64x256xbf16>
    %cst_14 = arith.constant dense<0.000000e+00> : vector<8x256xf32>
    %19 = tpu.matmul %17, %18, %cst_14 {dimension_numbers = #tpu.dot_dimension_numbers<[1], [0], [0], [1], [0, 0, 1, 1], [], []>} : vector<8x64xbf16>, vector<64x256xbf16>, vector<8x256xf32> -> vector<8x256xf32>
    %20 = arith.addf %16, %19 : vector<8x256xf32>
    %c0_15 = arith.constant 0 : index
    %c0_16 = arith.constant 0 : index
    %21 = vector.load %arg6[%c0_15, %c0_16] : memref<1x256xf32, #tpu.memory_space<vmem>>, vector<1x256xf32>
    %22 = vector.broadcast %21 : vector<1x256xf32> to vector<8x256xf32>
    %23 = arith.addf %20, %22 : vector<8x256xf32>
    %24 = vector.extract_strided_slice %23 {offsets = [0, 0], sizes = [8, 192], strides = [1, 1]} : vector<8x256xf32> to vector<8x192xf32>
    %25 = arith.negf %24 : vector<8x192xf32>
    %26 = math.exp %25 : vector<8x192xf32>
    %cst_17 = arith.constant 1.000000e+00 : f32
    %27 = vector.broadcast %cst_17 : f32 to vector<8x192xf32>
    %28 = arith.addf %27, %26 : vector<8x192xf32>
    %29 = arith.divf %27, %28 : vector<8x192xf32>
    %30 = vector.extract_strided_slice %23 {offsets = [0, 192], sizes = [8, 64], strides = [1, 1]} : vector<8x256xf32> to vector<8x64xf32>
    %31 = math.tanh %30 : vector<8x64xf32>
    %32 = vector.extract_strided_slice %29 {offsets = [0, 0], sizes = [8, 64], strides = [1, 1]} : vector<8x192xf32> to vector<8x64xf32>
    %33 = vector.extract_strided_slice %29 {offsets = [0, 64], sizes = [8, 64], strides = [1, 1]} : vector<8x192xf32> to vector<8x64xf32>
    %34 = vector.extract_strided_slice %29 {offsets = [0, 128], sizes = [8, 64], strides = [1, 1]} : vector<8x192xf32> to vector<8x64xf32>
    %35 = arith.mulf %33, %13 : vector<8x64xf32>
    %36 = arith.mulf %32, %31 : vector<8x64xf32>
    %37 = arith.addf %35, %36 : vector<8x64xf32>
    %38 = math.tanh %37 : vector<8x64xf32>
    %39 = arith.mulf %34, %38 : vector<8x64xf32>
    %c0_18 = arith.constant 0 : index
    %c0_19 = arith.constant 0 : index
    %40 = vector.load %arg13[%c0_18, %c0_19] : memref<8x128xf32, #tpu.memory_space<vmem>>, vector<8x64xf32>
    tpu.vector_store %arg13[%c0_18, %c0_19], %39 {strides = array<i32>} : memref<8x128xf32, #tpu.memory_space<vmem>>, vector<8x64xf32>,
    %c0_20 = arith.constant 0 : index
    %c0_21 = arith.constant 0 : index
    %41 = vector.load %arg14[%c0_20, %c0_21] : memref<8x128xf32, #tpu.memory_space<vmem>>, vector<8x64xf32>
    tpu.vector_store %arg14[%c0_20, %c0_21], %37 {strides = array<i32>} : memref<8x128xf32, #tpu.memory_space<vmem>>, vector<8x64xf32>,
    %42 = vector.extract_strided_slice %10 {offsets = [0, 64], sizes = [8, 64], strides = [1, 1]} : vector<8x128xf32> to vector<8x64xf32>
    %43 = vector.extract_strided_slice %11 {offsets = [0, 64], sizes = [8, 64], strides = [1, 1]} : vector<8x128xf32> to vector<8x64xf32>
    %44 = arith.truncf %39 : vector<8x64xf32> to vector<8x64xbf16>
    %c0_22 = arith.constant 0 : index
    %c0_23 = arith.constant 0 : index
    %45 = vector.load %arg7[%c0_22, %c0_23] : memref<64x256xbf16, #tpu.memory_space<vmem>>, vector<64x256xbf16>
    %cst_24 = arith.constant dense<0.000000e+00> : vector<8x256xf32>
    %46 = tpu.matmul %44, %45, %cst_24 {dimension_numbers = #tpu.dot_dimension_numbers<[1], [0], [0], [1], [0, 0, 1, 1], [], []>} : vector<8x64xbf16>, vector<64x256xbf16>, vector<8x256xf32> -> vector<8x256xf32>
    %47 = arith.truncf %42 : vector<8x64xf32> to vector<8x64xbf16>
    %c0_25 = arith.constant 0 : index
    %c0_26 = arith.constant 0 : index
    %48 = vector.load %arg8[%c0_25, %c0_26] : memref<64x256xbf16, #tpu.memory_space<vmem>>, vector<64x256xbf16>
    %cst_27 = arith.constant dense<0.000000e+00> : vector<8x256xf32>
    %49 = tpu.matmul %47, %48, %cst_27 {dimension_numbers = #tpu.dot_dimension_numbers<[1], [0], [0], [1], [0, 0, 1, 1], [], []>} : vector<8x64xbf16>, vector<64x256xbf16>, vector<8x256xf32> -> vector<8x256xf32>
    %50 = arith.addf %46, %49 : vector<8x256xf32>
    %c0_28 = arith.constant 0 : index
    %c0_29 = arith.constant 0 : index
    %51 = vector.load %arg9[%c0_28, %c0_29] : memref<1x256xf32, #tpu.memory_space<vmem>>, vector<1x256xf32>
    %52 = vector.broadcast %51 : vector<1x256xf32> to vector<8x256xf32>
    %53 = arith.addf %50, %52 : vector<8x256xf32>
    %54 = vector.extract_strided_slice %53 {offsets = [0, 0], sizes = [8, 192], strides = [1, 1]} : vector<8x256xf32> to vector<8x192xf32>
    %55 = arith.negf %54 : vector<8x192xf32>
    %56 = math.exp %55 : vector<8x192xf32>
    %cst_30 = arith.constant 1.000000e+00 : f32
    %57 = vector.broadcast %cst_30 : f32 to vector<8x192xf32>
    %58 = arith.addf %57, %56 : vector<8x192xf32>
    %59 = arith.divf %57, %58 : vector<8x192xf32>
    %60 = vector.extract_strided_slice %53 {offsets = [0, 192], sizes = [8, 64], strides = [1, 1]} : vector<8x256xf32> to vector<8x64xf32>
    %61 = math.tanh %60 : vector<8x64xf32>
    %62 = vector.extract_strided_slice %59 {offsets = [0, 0], sizes = [8, 64], strides = [1, 1]} : vector<8x192xf32> to vector<8x64xf32>
    %63 = vector.extract_strided_slice %59 {offsets = [0, 64], sizes = [8, 64], strides = [1, 1]} : vector<8x192xf32> to vector<8x64xf32>
    %64 = vector.extract_strided_slice %59 {offsets = [0, 128], sizes = [8, 64], strides = [1, 1]} : vector<8x192xf32> to vector<8x64xf32>
    %65 = arith.mulf %63, %43 : vector<8x64xf32>
    %66 = arith.mulf %62, %61 : vector<8x64xf32>
    %67 = arith.addf %65, %66 : vector<8x64xf32>
    %68 = math.tanh %67 : vector<8x64xf32>
    %69 = arith.mulf %64, %68 : vector<8x64xf32>
    %c0_31 = arith.constant 0 : index
    %c64 = arith.constant 64 : index
    %70 = vector.load %arg13[%c0_31, %c64] : memref<8x128xf32, #tpu.memory_space<vmem>>, vector<8x64xf32>
    tpu.vector_store %arg13[%c0_31, %c64], %69 {strides = array<i32>} : memref<8x128xf32, #tpu.memory_space<vmem>>, vector<8x64xf32>,
    %c0_32 = arith.constant 0 : index
    %c64_33 = arith.constant 64 : index
    %71 = vector.load %arg14[%c0_32, %c64_33] : memref<8x128xf32, #tpu.memory_space<vmem>>, vector<8x64xf32>
    tpu.vector_store %arg14[%c0_32, %c64_33], %67 {strides = array<i32>} : memref<8x128xf32, #tpu.memory_space<vmem>>, vector<8x64xf32>,
    %72 = arith.truncf %69 : vector<8x64xf32> to vector<8x64xbf16>
    %c0_34 = arith.constant 0 : index
    %c0_35 = arith.constant 0 : index
    %73 = vector.load %arg10[%c0_34, %c0_35] : memref<64x128xbf16, #tpu.memory_space<vmem>>, vector<64x128xbf16>
    %cst_36 = arith.constant dense<0.000000e+00> : vector<8x128xf32>
    %74 = tpu.matmul %72, %73, %cst_36 {dimension_numbers = #tpu.dot_dimension_numbers<[1], [0], [0], [1], [0, 0, 1, 1], [], []>} : vector<8x64xbf16>, vector<64x128xbf16>, vector<8x128xf32> -> vector<8x128xf32>
    %c0_37 = arith.constant 0 : index
    %c0_38 = arith.constant 0 : index
    %75 = vector.load %arg11[%c0_37, %c0_38] : memref<1x128xf32, #tpu.memory_space<vmem>>, vector<1x128xf32>
    %76 = vector.broadcast %75 : vector<1x128xf32> to vector<8x128xf32>
    %77 = arith.addf %74, %76 : vector<8x128xf32>
    %c0_39 = arith.constant 0 : index
    %c0_40 = arith.constant 0 : index
    %78 = vector.load %arg12[%c0_39, %c0_40] : memref<8x128xf32, #tpu.memory_space<vmem>>, vector<8x128xf32>
    tpu.vector_store %arg12[%c0_39, %c0_40], %77 {strides = array<i32>} : memref<8x128xf32, #tpu.memory_space<vmem>>, vector<8x128xf32>,
    return
  }
}

</mosaic_0001>

<llo_original>
// kernel: _decoder_forward.1
$region0: #{_decoder_forward.1}
  #allocation0 [shape = 'u32[]', space=smem, size = 0x4, offset = 0x4, fixed_abs, tag = 'smem constant byte address 0x4 - core index']
  #allocation1 [shape = 'u32[72,128]{1,0:T(1,128)}', space=vmem, size = 0x9000, scoped, tag = 'internal scratch']
  %s0 = inlined_call_operand.vmem [shape: s32[8,1], index: 0, kind: input, shape index: {}]
  %s1 = inlined_call_operand.hbm [shape: bf16[16,32], index: 1, kind: input, shape index: {}]
  %s2 = inlined_call_operand.vmem [shape: f32[8,128], index: 2, kind: input, shape index: {}, may-alias: {2,13}]
  %s3 = inlined_call_operand.vmem [shape: f32[8,128], index: 3, kind: input, shape index: {}, may-alias: {3,14}]
  %s4 = inlined_call_operand.vmem [shape: bf16[32,256], index: 4, kind: input, shape index: {}]
  %s5 = inlined_call_operand.hbm [shape: bf16[64,256], index: 5, kind: input, shape index: {}]
  %s6 = inlined_call_operand.vmem [shape: f32[1,256], index: 6, kind: input, shape index: {}]
  %s7 = inlined_call_operand.hbm [shape: bf16[64,256], index: 7, kind: input, shape index: {}]
  %s8 = inlined_call_operand.hbm [shape: bf16[64,256], index: 8, kind: input, shape index: {}]
  %s9 = inlined_call_operand.vmem [shape: f32[1,256], index: 9, kind: input, shape index: {}]
  %s10 = inlined_call_operand.vmem [shape: bf16[64,128], index: 10, kind: input, shape index: {}]
  %s11 = inlined_call_operand.vmem [shape: f32[1,128], index: 11, kind: input, shape index: {}]
  %s12 = inlined_call_operand.vmem [shape: f32[8,128], index: 12, kind: output, shape index: {0}]
  %s13 = inlined_call_operand.vmem [shape: f32[8,128], index: 13, kind: output, shape index: {1}, may-alias: {2,13}]
  %s14 = inlined_call_operand.vmem [shape: f32[8,128], index: 14, kind: output, shape index: {2}, may-alias: {3,14}]
  %15 = xla_tuple %s12, %s13, %s14
  %s16 = sld [smem:[#allocation0]]
  $region90: #{_decoder_forward.1} parent=0
    _
  %s18 = ssub.s32 1, %s16
  %s19 = scalar_select 0, %s18, %s16
  $region1: #{_decoder_forward.1} parent=0
    #allocation2 [shape = 'u8[4096]{0}', space=vmem, size = 0x1000, scoped, tag = 'input window, operand 1, single buffered']
    #allocation3 [shape = 's32[1]{0}', space=sflag, size = 0x4, scoped, tag = 'scoped memory for _decoder_forward.1']
    #allocation4 [shape = 'u8[32768]{0}', space=vmem, size = 0x8000, scoped, tag = 'input window, operand 5, single buffered']
    #allocation5 [shape = 's32[1]{0}', space=sflag, size = 0x4, scoped, tag = 'scoped memory for _decoder_forward.1']
    #allocation6 [shape = 'u8[32768]{0}', space=vmem, size = 0x8000, scoped, tag = 'input window, operand 7, single buffered']
    #allocation7 [shape = 'u8[32768]{0}', space=vmem, size = 0x8000, scoped, tag = 'input window, operand 8, single buffered']
    #allocation8 [shape = 's32[1]{0}', space=sflag, size = 0x4, scoped, tag = 'scoped memory for _decoder_forward.1']
    %20 = vsyncpa [#allocation3], 0
    %21 = vsyncpa [#allocation5], 0
    %22 = vsyncpa [#allocation8], 0
    // Predicated region
    $region2: #{_decoder_forward.1} parent=1 // pred_check
      _
    $region3: #{_decoder_forward.1} parent=1 // pred_check_branch
      %24 = sbr.rel (0) target = $region5
    $region4: #{_decoder_forward.1} parent=1 // pred_region
      _
    $region5: #{_decoder_forward.1} parent=1 // pred_fallthru
      _
    // Predicated region
    $region6: #{_decoder_forward.1} parent=1 // pred_check
      _
    $region7: #{_decoder_forward.1} parent=1 // pred_check_branch
      %26 = sbr.rel (0) target = $region9
    $region8: #{_decoder_forward.1} parent=1 // pred_region
      %28 = vsyncadd [#allocation3], 0
      %s29 = sshll.u32 %s1, 4
      %s30 = int_to_ptr.hbm [resolvable:$true] %s29
      %s31 = sshll.u32 [#allocation2], 4
      %s32 = int_to_ptr.vmem [resolvable:$true] %s31
      %37 = dma.hbm_to_vmem [thread:$0]  %s30, 128, %s32, [#allocation3], 64, 64, 4
    $region9: #{_decoder_forward.1} parent=1 // pred_fallthru
      _
    // Predicated region
    $region10: #{_decoder_forward.1} parent=1 // pred_check
      _
    $region11: #{_decoder_forward.1} parent=1 // pred_check_branch
      %39 = sbr.rel (0) target = $region13
    $region12: #{_decoder_forward.1} parent=1 // pred_region
      _
    $region13: #{_decoder_forward.1} parent=1 // pred_fallthru
      _
    // Predicated region
    $region14: #{_decoder_forward.1} parent=1 // pred_check
      _
    $region15: #{_decoder_forward.1} parent=1 // pred_check_branch
      %41 = sbr.rel (0) target = $region17
    $region16: #{_decoder_forward.1} parent=1 // pred_region
      _
    $region17: #{_decoder_forward.1} parent=1 // pred_fallthru
      _
    // Predicated region
    $region18: #{_decoder_forward.1} parent=1 // pred_check
      _
    $region19: #{_decoder_forward.1} parent=1 // pred_check_branch
      %43 = sbr.rel (0) target = $region21
    $region20: #{_decoder_forward.1} parent=1 // pred_region
      _
    $region21: #{_decoder_forward.1} parent=1 // pred_fallthru
      _
    // Predicated region
    $region22: #{_decoder_forward.1} parent=1 // pred_check
      _
    $region23: #{_decoder_forward.1} parent=1 // pred_check_branch
      %45 = sbr.rel (0) target = $region25
    $region24: #{_decoder_forward.1} parent=1 // pred_region
      %47 = vsyncadd [#allocation5], 0
      %s48 = sshll.u32 %s5, 4
      %s49 = int_to_ptr.hbm [resolvable:$true] %s48
      %s50 = sshll.u32 [#allocation4], 4
      %s51 = int_to_ptr.vmem [resolvable:$true] %s50
      %56 = dma.hbm_to_vmem [thread:$0]  %s49, 1024, %s51, [#allocation5], 128, 128, 8
    $region25: #{_decoder_forward.1} parent=1 // pred_fallthru
      _
    // Predicated region
    $region26: #{_decoder_forward.1} parent=1 // pred_check
      _
    $region27: #{_decoder_forward.1} parent=1 // pred_check_branch
      %58 = sbr.rel (0) target = $region29
    $region28: #{_decoder_forward.1} parent=1 // pred_region
      _
    $region29: #{_decoder_forward.1} parent=1 // pred_fallthru
      _
    // Predicated region
    $region30: #{_decoder_forward.1} parent=1 // pred_check
      _
    $region31: #{_decoder_forward.1} parent=1 // pred_check_branch
      %60 = sbr.rel (0) target = $region33
    $region32: #{_decoder_forward.1} parent=1 // pred_region
      %62 = vsyncadd [#allocation5], 0
      %s63 = sshll.u32 %s7, 4
      %s64 = int_to_ptr.hbm [resolvable:$true] %s63
      %s65 = sshll.u32 [#allocation6], 4
      %s66 = int_to_ptr.vmem [resolvable:$true] %s65
      %71 = dma.hbm_to_vmem [thread:$0]  %s64, 1024, %s66, [#allocation5], 128, 128, 8
    $region33: #{_decoder_forward.1} parent=1 // pred_fallthru
      _
    // Predicated region
    $region34: #{_decoder_forward.1} parent=1 // pred_check
      _
    $region35: #{_decoder_forward.1} parent=1 // pred_check_branch
      %73 = sbr.rel (0) target = $region37
    $region36: #{_decoder_forward.1} parent=1 // pred_region
      %75 = vsyncadd [#allocation8], 0
      %s76 = sshll.u32 %s8, 4
      %s77 = int_to_ptr.hbm [resolvable:$true] %s76
      %s78 = sshll.u32 [#allocation7], 4
      %s79 = int_to_ptr.vmem [resolvable:$true] %s78
      %84 = dma.hbm_to_vmem [thread:$0]  %s77, 1024, %s79, [#allocation8], 128, 128, 8
    $region37: #{_decoder_forward.1} parent=1 // pred_fallthru
      _
    // Predicated region
    $region38: #{_decoder_forward.1} parent=1 // pred_check
      _
    $region39: #{_decoder_forward.1} parent=1 // pred_check_branch
      %86 = sbr.rel (0) target = $region41
    $region40: #{_decoder_forward.1} parent=1 // pred_region
      _
    $region41: #{_decoder_forward.1} parent=1 // pred_fallthru
      _
    // Predicated region
    $region42: #{_decoder_forward.1} parent=1 // pred_check
      _
    $region43: #{_decoder_forward.1} parent=1 // pred_check_branch
      %88 = sbr.rel (0) target = $region45
    $region44: #{_decoder_forward.1} parent=1 // pred_region
      _
    $region45: #{_decoder_forward.1} parent=1 // pred_fallthru
      _
    // Predicated region
    $region46: #{_decoder_forward.1} parent=1 // pred_check
      _
    $region47: #{_decoder_forward.1} parent=1 // pred_check_branch
      %90 = sbr.rel (0) target = $region49
    $region48: #{_decoder_forward.1} parent=1 // pred_region
      _
    $region49: #{_decoder_forward.1} parent=1 // pred_fallthru
      _
    // Predicated region
    $region50: #{_decoder_forward.1} parent=1 // pred_check
      _
    $region51: #{_decoder_forward.1} parent=1 // pred_check_branch
      %92 = sbr.rel (0) target = $region53
    $region52: #{_decoder_forward.1} parent=1 // pred_region
      %94 = dma.done [#allocation3], 128
    $region53: #{_decoder_forward.1} parent=1 // pred_fallthru
      _
    // Predicated region
    $region54: #{_decoder_forward.1} parent=1 // pred_check
      _
    $region55: #{_decoder_forward.1} parent=1 // pred_check_branch
      %96 = sbr.rel (0) target = $region57
    $region56: #{_decoder_forward.1} parent=1 // pred_region
      %98 = dma.done [#allocation5], 1024
    $region57: #{_decoder_forward.1} parent=1 // pred_fallthru
      _
    // Predicated region
    $region58: #{_decoder_forward.1} parent=1 // pred_check
      _
    $region59: #{_decoder_forward.1} parent=1 // pred_check_branch
      %100 = sbr.rel (0) target = $region61
    $region60: #{_decoder_forward.1} parent=1 // pred_region
      %102 = dma.done [#allocation5], 1024
    $region61: #{_decoder_forward.1} parent=1 // pred_fallthru
      _
    // Predicated region
    $region62: #{_decoder_forward.1} parent=1 // pred_check
      _
    $region63: #{_decoder_forward.1} parent=1 // pred_check_branch
      %104 = sbr.rel (0) target = $region65
    $region64: #{_decoder_forward.1} parent=1 // pred_region
      %106 = dma.done [#allocation8], 1024
    $region65: #{_decoder_forward.1} parent=1 // pred_fallthru
      _
    %v108 = vld [vmem:[%s0] sm:$0xff]
    %v109 = vlaneseq
    %v110 = vand.u32 %v109, 127
    %111 = vset.pattern.permute.xlu0 0
    %112 = vperm.xlu0 %111, %v108
    %v113 = vpop.permute.xlu0 %112
    %vm114 = vcmp.eq.s32.totalorder %v110, %v113
    %v115 = vsel %vm114, 1.0, 0.0
    %v116 = vpack.c.bf16 %v115, %v115
    %v117 = vld [vmem:[#allocation2] sm:$0xf]
    %v118 = vld [vmem:[#allocation2 + $0x4] sm:$0xf]
    %v121 = vunpack.c.l.b16 %v117
    %v122 = vunpack.c.l.b16 %v118
    %v123 = vpack.c.b16 %v122, %v121
    %vm125 = vcmask 130048
    %v127 = vsel %vm125, %v116, 0
    %129 = vmatpush.bf16.msra.mxu0 0
    %130 = vmatpush.bf16.msra.mxu0 0
    %131 = vmatpush.bf16.msra.mxu0 0
    %132 = vmatpush.bf16.msra.mxu0 0
    %133 = vmatpush.bf16.msra.mxu0 0
    %134 = vmatpush.bf16.msra.mxu0 0
    %135 = vmatpush.bf16.msra.mxu0 0
    %136 = vmatpush.bf16.msra.mxu0 %v123
    %137 = vmatmul.bf16.gmra.mxu0 %v127
    %v138 = vpop.f32.mrf.mxu0
    %v139 = vadd.f32 0.0, %v138
    %v140 = vpop.f32.mrf.mxu0
    %141 = vdwg.mxu0
    %v142 = vld [vmem:[%s2] sm:$0xff]
    %v143 = vld [vmem:[%s3] sm:$0xff]
    %v144 = vpack.c.bf16 %v139, %v139
    %v145 = vld [vmem:[%s4] sm:$0xff]
    %v146 = vld [vmem:[%s4 + $0x8] sm:$0xff]
    %v147 = vld [vmem:[%s4 + $0x10] sm:$0xff]
    %v148 = vld [vmem:[%s4 + $0x18] sm:$0xff]
    %v149 = vpack.c.bf16 %v142, %v142
    %v150 = vld [vmem:[#allocation4] sm:$0xff]
    %v151 = vld [vmem:[#allocation4 + $0x8] sm:$0xff]
    %v152 = vld [vmem:[#allocation4 + $0x10] sm:$0xff]
    %v153 = vld [vmem:[#allocation4 + $0x18] sm:$0xff]
    %v154 = vld [vmem:[#allocation4 + $0x20] sm:$0xff]
    %v155 = vld [vmem:[#allocation4 + $0x28] sm:$0xff]
    %v156 = vld [vmem:[#allocation4 + $0x30] sm:$0xff]
    %v157 = vld [vmem:[#allocation4 + $0x38] sm:$0xff]
    %v166 = vunpack.c.l.b16 %v150
    %v167 = vunpack.c.h.b16 %v150
    %v168 = vunpack.c.l.b16 %v151
    %v169 = vunpack.c.h.b16 %v151
    %v170 = vunpack.c.l.b16 %v152
    %v171 = vunpack.c.h.b16 %v152
    %v172 = vunpack.c.l.b16 %v153
    %v173 = vunpack.c.h.b16 %v153
    %v174 = vunpack.c.l.b16 %v154
    %v175 = vunpack.c.h.b16 %v154
    %v176 = vunpack.c.l.b16 %v155
    %v177 = vunpack.c.h.b16 %v155
    %v178 = vunpack.c.l.b16 %v156
    %v179 = vunpack.c.h.b16 %v156
    %v180 = vunpack.c.l.b16 %v157
    %v181 = vunpack.c.h.b16 %v157
    %v182 = vpack.c.b16 %v168, %v166
    %v183 = vpack.c.b16 %v169, %v167
    %v184 = vpack.c.b16 %v172, %v170
    %v185 = vpack.c.b16 %v173, %v171
    %v186 = vpack.c.b16 %v176, %v174
    %v187 = vpack.c.b16 %v177, %v175
    %v188 = vpack.c.b16 %v180, %v178
    %v189 = vpack.c.b16 %v181, %v179
    %vm198 = vcmask 523264
    %v200 = vsel %vm198, %v149, 0
    %202 = vmatpush.bf16.msra.mxu0 0
    %203 = vmatpush.bf16.msra.mxu0 0
    %204 = vmatpush.bf16.msra.mxu0 0
    %205 = vmatpush.bf16.msra.mxu0 0
    %206 = vmatpush.bf16.msra.mxu0 %v188
    %207 = vmatpush.bf16.msra.mxu0 %v186
    %208 = vmatpush.bf16.msra.mxu0 %v184
    %209 = vmatpush.bf16.msra.mxu0 %v182
    %210 = vmatmul.bf16.gmra.mxu0 %v200
    %v211 = vpop.f32.mrf.mxu0
    %v212 = vadd.f32 0.0, %v211
    %v213 = vpop.f32.mrf.mxu0
    %214 = vdwg.mxu0
    %215 = vmatpush.bf16.msra.mxu0 0
    %216 = vmatpush.bf16.msra.mxu0 0
    %217 = vmatpush.bf16.msra.mxu0 0
    %218 = vmatpush.bf16.msra.mxu0 0
    %219 = vmatpush.bf16.msra.mxu0 %v189
    %220 = vmatpush.bf16.msra.mxu0 %v187
    %221 = vmatpush.bf16.msra.mxu0 %v185
    %222 = vmatpush.bf16.msra.mxu0 %v183
    %223 = vmatmul.bf16.gmra.mxu0 %v200
    %v224 = vpop.f32.mrf.mxu0
    %v225 = vadd.f32 0.0, %v224
    %v226 = vpop.f32.mrf.mxu0
    %227 = vdwg.mxu0
    %v232 = vunpack.c.l.b16 %v145
    %v233 = vunpack.c.h.b16 %v145
    %v234 = vunpack.c.l.b16 %v146
    %v235 = vunpack.c.h.b16 %v146
    %v236 = vunpack.c.l.b16 %v147
    %v237 = vunpack.c.h.b16 %v147
    %v238 = vunpack.c.l.b16 %v148
    %v239 = vunpack.c.h.b16 %v148
    %v240 = vpack.c.b16 %v234, %v232
    %v241 = vpack.c.b16 %v235, %v233
    %v242 = vpack.c.b16 %v238, %v236
    %v243 = vpack.c.b16 %v239, %v237
    %vm248 = vcmask 261120
    %v250 = vsel %vm248, %v144, 0
    %252 = vmatpush.bf16.msra.mxu0 0
    %253 = vmatpush.bf16.msra.mxu0 0
    %254 = vmatpush.bf16.msra.mxu0 0
    %255 = vmatpush.bf16.msra.mxu0 0
    %256 = vmatpush.bf16.msra.mxu0 0
    %257 = vmatpush.bf16.msra.mxu0 0
    %258 = vmatpush.bf16.msra.mxu0 %v242
    %259 = vmatpush.bf16.msra.mxu0 %v240
    %260 = vmatmul.bf16.gmra.mxu0 %v250
    %v261 = vpop.f32.mrf.mxu0
    %v262 = vadd.f32 %v212, %v261
    %v263 = vpop.f32.mrf.mxu0
    %264 = vdwg.mxu0
    %265 = vmatpush.bf16.msra.mxu0 0
    %266 = vmatpush.bf16.msra.mxu0 0
    %267 = vmatpush.bf16.msra.mxu0 0
    %268 = vmatpush.bf16.msra.mxu0 0
    %269 = vmatpush.bf16.msra.mxu0 0
    %270 = vmatpush.bf16.msra.mxu0 0
    %271 = vmatpush.bf16.msra.mxu0 %v243
    %272 = vmatpush.bf16.msra.mxu0 %v241
    %273 = vmatmul.bf16.gmra.mxu0 %v250
    %v274 = vpop.f32.mrf.mxu0
    %v275 = vadd.f32 %v225, %v274
    %v276 = vpop.f32.mrf.mxu0
    %277 = vdwg.mxu0
    %v278 = vld [vmem:[%s6] sm:$0x3]
    %v280 = vperm.slane %v278, 0
    %v281 = vperm.slane %v278, 1
    %v284 = vadd.f32 %v262, %v280
    %v285 = vadd.f32 %v275, %v281
    %v286 = vxor.u32 %v284, 2147483648
    %v287 = vxor.u32 %v285, 2147483648
    %v288 = vmul.f32 %v286, 1.442695
    %v289 = vpow.pop %v288
    %v290 = vmul.f32 %v287, 1.442695
    %v291 = vpow.pop %v290
    %v292 = vadd.f32 %v289, 1.0
    %v293 = vadd.f32 %v291, 1.0
    %v294 = vrcp.pop %v292
    %v295 = vmul.f32 %v292, %v294
    %v296 = vsub.f32 1.0, %v295
    %v297 = vmul.f32 %v294, %v296
    %v298 = vadd.f32 %v294, %v297
    %vm299 = vweird.f32 %v292
    %vm300 = vweird.f32 %v294
    %vm301 = vmor %vm299, %vm300
    %v302 = vsel %vm301, %v294, %v298
    %v303 = vand.u32 2147483647, %v292
    %vm304 = vcmp.eq.f32.partialorder %v303, 8.507059e+37
    %v305 = vand.u32 %v292, 2147483648
    %v306 = vor.u32 1.1754944e-38, %v305
    %v307 = vsel %vm304, %v306, %v302
    %v308 = vmul.f32 1.0, %v307
    %v309 = vrcp.pop %v293
    %v310 = vmul.f32 %v293, %v309
    %v311 = vsub.f32 1.0, %v310
    %v312 = vmul.f32 %v309, %v311
    %v313 = vadd.f32 %v309, %v312
    %vm314 = vweird.f32 %v293
    %vm315 = vweird.f32 %v309
    %vm316 = vmor %vm314, %vm315
    %v317 = vsel %vm316, %v309, %v313
    %v318 = vand.u32 2147483647, %v293
    %vm319 = vcmp.eq.f32.partialorder %v318, 8.507059e+37
    %v320 = vand.u32 %v293, 2147483648
    %v321 = vor.u32 1.1754944e-38, %v320
    %v322 = vsel %vm319, %v321, %v317
    %v323 = vmul.f32 1.0, %v322
    %v324 = vtanh.pop %v285
    %326 = vrot.lane.b32.xlu0 %v143, 64
    %v327 = vpop.permute.xlu0 %326
    %v329 = vmul.f32 %v308, %v327
    %331 = vrot.lane.b32.xlu0 %v324, 64
    %v332 = vpop.permute.xlu0 %331
    %v334 = vmul.f32 %v308, %v332
    %336 = vrot.lane.b32.xlu0 %v334, 64
    %v337 = vpop.permute.xlu0 %336
    %v339 = vadd.f32 %v329, %v337
    %v340 = vtanh.pop %v339
    %342 = vrot.lane.b32.xlu0 %v340, 64
    %v343 = vpop.permute.xlu0 %342
    %v345 = vmul.f32 %v323, %v343
    %346 = vst.msk [vmem:[%s13] sm:$0xff] %vm198, %v345
    %348 = vrot.lane.b32.xlu0 %v339, 64
    %v349 = vpop.permute.xlu0 %348
    %351 = vst.msk [vmem:[%s14] sm:$0xff] %vm198, %v349
    %v352 = vpack.c.bf16 %v345, %v345
    %v353 = vld [vmem:[#allocation6] sm:$0xff]
    %v354 = vld [vmem:[#allocation6 + $0x8] sm:$0xff]
    %v355 = vld [vmem:[#allocation6 + $0x10] sm:$0xff]
    %v356 = vld [vmem:[#allocation6 + $0x18] sm:$0xff]
    %v357 = vld [vmem:[#allocation6 + $0x20] sm:$0xff]
    %v358 = vld [vmem:[#allocation6 + $0x28] sm:$0xff]
    %v359 = vld [vmem:[#allocation6 + $0x30] sm:$0xff]
    %v360 = vld [vmem:[#allocation6 + $0x38] sm:$0xff]
    %v361 = vld [vmem:[#allocation7] sm:$0xff]
    %v362 = vld [vmem:[#allocation7 + $0x8] sm:$0xff]
    %v363 = vld [vmem:[#allocation7 + $0x10] sm:$0xff]
    %v364 = vld [vmem:[#allocation7 + $0x18] sm:$0xff]
    %v365 = vld [vmem:[#allocation7 + $0x20] sm:$0xff]
    %v366 = vld [vmem:[#allocation7 + $0x28] sm:$0xff]
    %v367 = vld [vmem:[#allocation7 + $0x30] sm:$0xff]
    %v368 = vld [vmem:[#allocation7 + $0x38] sm:$0xff]
    %370 = vrot.lane.b32.xlu0 %v149, 64
    %v371 = vpop.permute.xlu0 %370
    %v380 = vunpack.c.l.b16 %v361
    %v381 = vunpack.c.h.b16 %v361
    %v382 = vunpack.c.l.b16 %v362
    %v383 = vunpack.c.h.b16 %v362
    %v384 = vunpack.c.l.b16 %v363
    %v385 = vunpack.c.h.b16 %v363
    %v386 = vunpack.c.l.b16 %v364
    %v387 = vunpack.c.h.b16 %v364
    %v388 = vunpack.c.l.b16 %v365
    %v389 = vunpack.c.h.b16 %v365
    %v390 = vunpack.c.l.b16 %v366
    %v391 = vunpack.c.h.b16 %v366
    %v392 = vunpack.c.l.b16 %v367
    %v393 = vunpack.c.h.b16 %v367
    %v394 = vunpack.c.l.b16 %v368
    %v395 = vunpack.c.h.b16 %v368
    %v396 = vpack.c.b16 %v382, %v380
    %v397 = vpack.c.b16 %v383, %v381
    %v398 = vpack.c.b16 %v386, %v384
    %v399 = vpack.c.b16 %v387, %v385
    %v400 = vpack.c.b16 %v390, %v388
    %v401 = vpack.c.b16 %v391, %v389
    %v402 = vpack.c.b16 %v394, %v392
    %v403 = vpack.c.b16 %v395, %v393
    %v413 = vsel %vm198, %v371, 0
    %415 = vmatpush.bf16.msra.mxu0 0
    %416 = vmatpush.bf16.msra.mxu0 0
    %417 = vmatpush.bf16.msra.mxu0 0
    %418 = vmatpush.bf16.msra.mxu0 0
    %419 = vmatpush.bf16.msra.mxu0 %v402
    %420 = vmatpush.bf16.msra.mxu0 %v400
    %421 = vmatpush.bf16.msra.mxu0 %v398
    %422 = vmatpush.bf16.msra.mxu0 %v396
    %423 = vmatmul.bf16.gmra.mxu0 %v413
    %v424 = vpop.f32.mrf.mxu0
    %v425 = vadd.f32 0.0, %v424
    %v426 = vpop.f32.mrf.mxu0
    %427 = vdwg.mxu0
    %428 = vmatpush.bf16.msra.mxu0 0
    %429 = vmatpush.bf16.msra.mxu0 0
    %430 = vmatpush.bf16.msra.mxu0 0
    %431 = vmatpush.bf16.msra.mxu0 0
    %432 = vmatpush.bf16.msra.mxu0 %v403
    %433 = vmatpush.bf16.msra.mxu0 %v401
    %434 = vmatpush.bf16.msra.mxu0 %v399
    %435 = vmatpush.bf16.msra.mxu0 %v397
    %436 = vmatmul.bf16.gmra.mxu0 %v413
    %v437 = vpop.f32.mrf.mxu0
    %v438 = vadd.f32 0.0, %v437
    %v439 = vpop.f32.mrf.mxu0
    %440 = vdwg.mxu0
    %v449 = vunpack.c.l.b16 %v353
    %v450 = vunpack.c.h.b16 %v353
    %v451 = vunpack.c.l.b16 %v354
    %v452 = vunpack.c.h.b16 %v354
    %v453 = vunpack.c.l.b16 %v355
    %v454 = vunpack.c.h.b16 %v355
    %v455 = vunpack.c.l.b16 %v356
    %v456 = vunpack.c.h.b16 %v356
    %v457 = vunpack.c.l.b16 %v357
    %v458 = vunpack.c.h.b16 %v357
    %v459 = vunpack.c.l.b16 %v358
    %v460 = vunpack.c.h.b16 %v358
    %v461 = vunpack.c.l.b16 %v359
    %v462 = vunpack.c.h.b16 %v359
    %v463 = vunpack.c.l.b16 %v360
    %v464 = vunpack.c.h.b16 %v360
    %v465 = vpack.c.b16 %v451, %v449
    %v466 = vpack.c.b16 %v452, %v450
    %v467 = vpack.c.b16 %v455, %v453
    %v468 = vpack.c.b16 %v456, %v454
    %v469 = vpack.c.b16 %v459, %v457
    %v470 = vpack.c.b16 %v460, %v458
    %v471 = vpack.c.b16 %v463, %v461
    %v472 = vpack.c.b16 %v464, %v462
    %v482 = vsel %vm198, %v352, 0
    %484 = vmatpush.bf16.msra.mxu0 0
    %485 = vmatpush.bf16.msra.mxu0 0
    %486 = vmatpush.bf16.msra.mxu0 0
    %487 = vmatpush.bf16.msra.mxu0 0
    %488 = vmatpush.bf16.msra.mxu0 %v471
    %489 = vmatpush.bf16.msra.mxu0 %v469
    %490 = vmatpush.bf16.msra.mxu0 %v467
    %491 = vmatpush.bf16.msra.mxu0 %v465
    %492 = vmatmul.bf16.gmra.mxu0 %v482
    %v493 = vpop.f32.mrf.mxu0
    %v494 = vadd.f32 %v425, %v493
    %v495 = vpop.f32.mrf.mxu0
    %496 = vdwg.mxu0
    %497 = vmatpush.bf16.msra.mxu0 0
    %498 = vmatpush.bf16.msra.mxu0 0
    %499 = vmatpush.bf16.msra.mxu0 0
    %500 = vmatpush.bf16.msra.mxu0 0
    %501 = vmatpush.bf16.msra.mxu0 %v472
    %502 = vmatpush.bf16.msra.mxu0 %v470
    %503 = vmatpush.bf16.msra.mxu0 %v468
    %504 = vmatpush.bf16.msra.mxu0 %v466
    %505 = vmatmul.bf16.gmra.mxu0 %v482
    %v506 = vpop.f32.mrf.mxu0
    %v507 = vadd.f32 %v438, %v506
    %v508 = vpop.f32.mrf.mxu0
    %509 = vdwg.mxu0
    %v510 = vld [vmem:[%s9] sm:$0x3]
    %v512 = vperm.slane %v510, 0
    %v513 = vperm.slane %v510, 1
    %v516 = vadd.f32 %v494, %v512
    %v517 = vadd.f32 %v507, %v513
    %v518 = vxor.u32 %v516, 2147483648
    %v519 = vxor.u32 %v517, 2147483648
    %v520 = vmul.f32 %v518, 1.442695
    %v521 = vpow.pop %v520
    %v522 = vmul.f32 %v519, 1.442695
    %v523 = vpow.pop %v522
    %v524 = vadd.f32 %v521, 1.0
    %v525 = vadd.f32 %v523, 1.0
    %v526 = vrcp.pop %v524
    %v527 = vmul.f32 %v524, %v526
    %v528 = vsub.f32 1.0, %v527
    %v529 = vmul.f32 %v526, %v528
    %v530 = vadd.f32 %v526, %v529
    %vm531 = vweird.f32 %v524
    %vm532 = vweird.f32 %v526
    %vm533 = vmor %vm531, %vm532
    %v534 = vsel %vm533, %v526, %v530
    %v535 = vand.u32 2147483647, %v524
    %vm536 = vcmp.eq.f32.partialorder %v535, 8.507059e+37
    %v537 = vand.u32 %v524, 2147483648
    %v538 = vor.u32 1.1754944e-38, %v537
    %v539 = vsel %vm536, %v538, %v534
    %v540 = vmul.f32 1.0, %v539
    %v541 = vrcp.pop %v525
    %v542 = vmul.f32 %v525, %v541
    %v543 = vsub.f32 1.0, %v542
    %v544 = vmul.f32 %v541, %v543
    %v545 = vadd.f32 %v541, %v544
    %vm546 = vweird.f32 %v525
    %vm547 = vweird.f32 %v541
    %vm548 = vmor %vm546, %vm547
    %v549 = vsel %vm548, %v541, %v545
    %v550 = vand.u32 2147483647, %v525
    %vm551 = vcmp.eq.f32.partialorder %v550, 8.507059e+37
    %v552 = vand.u32 %v525, 2147483648
    %v553 = vor.u32 1.1754944e-38, %v552
    %v554 = vsel %vm551, %v553, %v549
    %v555 = vmul.f32 1.0, %v554
    %v556 = vtanh.pop %v517
    %v557 = vmul.f32 %v540, %v143
    %559 = vrot.lane.b32.xlu0 %v556, 64
    %v560 = vpop.permute.xlu0 %559
    %v562 = vmul.f32 %v540, %v560
    %564 = vrot.lane.b32.xlu0 %v562, 64
    %v565 = vpop.permute.xlu0 %564
    %v567 = vadd.f32 %v557, %v565
    %v568 = vtanh.pop %v567
    %570 = vrot.lane.b32.xlu0 %v568, 64
    %v571 = vpop.permute.xlu0 %570
    %v573 = vmul.f32 %v555, %v571
    %575 = vrot.lane.b32.xlu0 %v573, 64
    %v576 = vpop.permute.xlu0 %575
    %vm578 = vcmask 1048064
    %579 = vst.msk [vmem:[%s13] sm:$0xff] %vm578, %v576
    %580 = vst.msk [vmem:[%s14] sm:$0xff] %vm578, %v567
    %v581 = vpack.c.bf16 %v573, %v573
    %v582 = vld [vmem:[%s10] sm:$0xf]
    %v583 = vld [vmem:[%s10 + $0x4] sm:$0xf]
    %v584 = vld [vmem:[%s10 + $0x8] sm:$0xf]
    %v585 = vld [vmem:[%s10 + $0xc] sm:$0xf]
    %v586 = vld [vmem:[%s10 + $0x10] sm:$0xf]
    %v587 = vld [vmem:[%s10 + $0x14] sm:$0xf]
    %v588 = vld [vmem:[%s10 + $0x18] sm:$0xf]
    %v589 = vld [vmem:[%s10 + $0x1c] sm:$0xf]
    %v590 = vld [vmem:[%s11] sm:$0x1]
    %v592 = vperm.slane %v590, 0
    %v602 = vunpack.c.l.b16 %v582
    %v603 = vunpack.c.l.b16 %v583
    %v604 = vunpack.c.l.b16 %v584
    %v605 = vunpack.c.l.b16 %v585
    %v606 = vunpack.c.l.b16 %v586
    %v607 = vunpack.c.l.b16 %v587
    %v608 = vunpack.c.l.b16 %v588
    %v609 = vunpack.c.l.b16 %v589
    %v610 = vpack.c.b16 %v603, %v602
    %v611 = vpack.c.b16 %v605, %v604
    %v612 = vpack.c.b16 %v607, %v606
    %v613 = vpack.c.b16 %v609, %v608
    %v619 = vsel %vm198, %v581, 0
    %621 = vmatpush.bf16.msra.mxu0 0
    %622 = vmatpush.bf16.msra.mxu0 0
    %623 = vmatpush.bf16.msra.mxu0 0
    %624 = vmatpush.bf16.msra.mxu0 0
    %625 = vmatpush.bf16.msra.mxu0 %v613
    %626 = vmatpush.bf16.msra.mxu0 %v612
    %627 = vmatpush.bf16.msra.mxu0 %v611
    %628 = vmatpush.bf16.msra.mxu0 %v610
    %629 = vmatmul.bf16.gmra.mxu0 %v619
    %v630 = vpop.f32.mrf.mxu0
    %v631 = vadd.f32 %v592, %v630
    %v632 = vpop.f32.mrf.mxu0
    %633 = vdwg.mxu0
    %634 = vst [vmem:[%s12] sm:$0xff] %v631
    // Predicated region
    $region66: #{_decoder_forward.1} parent=1 // pred_check
      _
    $region67: #{_decoder_forward.1} parent=1 // pred_check_branch
      %636 = sbr.rel (0) target = $region69
    $region68: #{_decoder_forward.1} parent=1 // pred_region
      _
    $region69: #{_decoder_forward.1} parent=1 // pred_fallthru
      _
    // Predicated region
    $region70: #{_decoder_forward.1} parent=1 // pred_check
      _
    $region71: #{_decoder_forward.1} parent=1 // pred_check_branch
      %638 = sbr.rel (0) target = $region73
    $region72: #{_decoder_forward.1} parent=1 // pred_region
      _
    $region73: #{_decoder_forward.1} parent=1 // pred_fallthru
      _
    // Predicated region
    $region74: #{_decoder_forward.1} parent=1 // pred_check
      _
    $region75: #{_decoder_forward.1} parent=1 // pred_check_branch
      %640 = sbr.rel (0) target = $region77
    $region76: #{_decoder_forward.1} parent=1 // pred_region
      _
    $region77: #{_decoder_forward.1} parent=1 // pred_fallthru
      _
    // Predicated region
    $region78: #{_decoder_forward.1} parent=1 // pred_check
      _
    $region79: #{_decoder_forward.1} parent=1 // pred_check_branch
      %642 = sbr.rel (0) target = $region81
    $region80: #{_decoder_forward.1} parent=1 // pred_region
      _
    $region81: #{_decoder_forward.1} parent=1 // pred_fallthru
      _
    // Predicated region
    $region82: #{_decoder_forward.1} parent=1 // pred_check
      _
    $region83: #{_decoder_forward.1} parent=1 // pred_check_branch
      %644 = sbr.rel (0) target = $region85
    $region84: #{_decoder_forward.1} parent=1 // pred_region
      _
    $region85: #{_decoder_forward.1} parent=1 // pred_fallthru
      _
    // Predicated region
    $region86: #{_decoder_forward.1} parent=1 // pred_check
      _
    $region87: #{_decoder_forward.1} parent=1 // pred_check_branch
      %646 = sbr.rel (0) target = $region89
    $region88: #{_decoder_forward.1} parent=1 // pred_region
      _
    $region89: #{_decoder_forward.1} parent=1 // pred_fallthru
      _
    %647 = vsyncpa [#allocation3], 1
    %648 = vsyncpa [#allocation5], 1
    %649 = vsyncpa [#allocation8], 1

</llo_original>
